<compile_context>
chip_gen: v5e
topology: v5e:2x2
jax: 0.10.0
libtpu: 0.0.40
codegen_flags: <defaults>
</compile_context>

<pallas_src>
import jax
import jax.numpy as jnp
from jax.experimental import pallas as pl
from jax.experimental.pallas import tpu as pltpu


def _round_up(x, m):
    return ((x + m - 1) // m) * m


def img_linear_kernel(x_ref, wt_ref, b_ref, o_ref):
    # x_ref : [TILE_M, F]      (one tile of tokens)
    # wt_ref: [F, H_pad]       (resident across the grid; H_pad % 128 == 0)
    # b_ref : [1, H_pad]       (resident across the grid)
    # o_ref : [TILE_M, H_pad]  (lane-dense stores)
    acc = jnp.dot(x_ref[...], wt_ref[...], preferred_element_type=jnp.float32)
    acc = acc + b_ref[...].astype(jnp.float32)            # broadcast bias over rows
    o_ref[...] = jnp.tanh(acc).astype(o_ref.dtype)         # Tanh; dropout = identity (eval)


def prepare_img_linear_params(weight, bias):
    """One-time parameter prep (outside the hot path).

    weight: [H, F] (nn.Linear convention), bias: [H].
    Returns (wt_pad [F, H_pad], b_pad [1, H_pad], H) with H_pad a multiple of 128
    so the kernel's output stores are lane-dense. Padded columns are zero, so
    their outputs are tanh(0)=0 and simply sliced away.
    """
    H, F = weight.shape
    H_pad = _round_up(H, 128)
    wt_pad = jnp.zeros((F, H_pad), weight.dtype).at[:, :H].set(weight.T)
    b_pad = jnp.zeros((1, H_pad), bias.dtype).at[0, :H].set(bias)
    return wt_pad, b_pad, H


def img_linear(img, wt_pad, b_pad, hidden_size, *, tile_m_max=1024):
    """img: [B, S, F] float32; wt_pad/b_pad from prepare_img_linear_params."""
    B, S, F = img.shape
    H_pad = wt_pad.shape[1]
    M = B * S
    x = img.reshape(M, F)

    # Tile the token axis: big tiles for pipelining, rounded to sublane (8).
    tile_m = min(tile_m_max, _round_up(M, 8))
    M_pad = _round_up(M, tile_m)
    if M_pad != M:
        x = jnp.zeros((M_pad, F), x.dtype).at[:M].set(x)

    cost = pl.CostEstimate(
        flops=2 * M_pad * F * H_pad,
        transcendentals=M_pad * H_pad,
        bytes_accessed=4 * (M_pad * F + F * H_pad + H_pad + M_pad * H_pad),
    )

    out = pl.pallas_call(
        img_linear_kernel,
        out_shape=jax.ShapeDtypeStruct((M_pad, H_pad), img.dtype),
        grid_spec=pltpu.PrefetchScalarGridSpec(
            num_scalar_prefetch=0,
            grid=(M_pad // tile_m,),
            in_specs=[
                pl.BlockSpec((tile_m, F), lambda i: (i, 0)),    # x: tiled over M
                pl.BlockSpec((F, H_pad), lambda i: (0, 0)),     # weight: resident
                pl.BlockSpec((1, H_pad), lambda i: (0, 0)),     # bias: resident
            ],
            out_specs=pl.BlockSpec((tile_m, H_pad), lambda i: (i, 0)),
        ),
        compiler_params=pltpu.CompilerParams(
            dimension_semantics=("parallel",),       # shard M across TCs (v7x)
            vmem_limit_bytes=32 * 1024 * 1024,
        ),
        cost_estimate=cost,
    )(x, wt_pad, b_pad)

    return out[:M, :hidden_size].reshape(B, S, hidden_size)


if __name__ == "__main__":
    # Small shapes implied by the module: img features -> hidden projection.
    B, S = 2, 8           # batch, sequence of image regions
    img_feat_dim = 16
    hidden_size = 32
    dropout_p = 0.1       # unused at inference

    key = jax.random.PRNGKey(0)
    k_img, k_w, k_b = jax.random.split(key, 3)

    # Deterministic parameter init mimicking nn.Linear: U(-1/sqrt(fan_in), 1/sqrt(fan_in))
    bound = 1.0 / (img_feat_dim ** 0.5)
    weight = jax.random.uniform(k_w, (hidden_size, img_feat_dim),
                                dtype=jnp.float32, minval=-bound, maxval=bound)
    bias = jax.random.uniform(k_b, (hidden_size,),
                              dtype=jnp.float32, minval=-bound, maxval=bound)

    img = jax.random.normal(k_img, (B, S, img_feat_dim), dtype=jnp.float32)

    # One-time parameter prep (transpose + lane-pad), then run the kernel.
    wt_pad, b_pad, _ = prepare_img_linear_params(weight, bias)
    out = img_linear(img, wt_pad, b_pad, hidden_size)
    out = jax.block_until_ready(out)

    # Reference check in plain JAX (eval-mode dropout = identity).
    ref = jnp.tanh(jnp.einsum("bsf,hf->bsh", img, weight) + bias)
    assert out.shape == (B, S, hidden_size)
    assert jnp.allclose(out, ref, atol=1e-5, rtol=1e-5)

    print("KERNEL_OK")
</pallas_src>

<mosaic_0001>
module attributes {stable_mosaic.version = 11 : i64} {
  func.func @img_linear_kernel(%arg0: i32, %arg1: memref<16x16xf32, #tpu.memory_space<vmem>>, %arg2: memref<16x128xf32, #tpu.memory_space<vmem>>, %arg3: memref<1x128xf32, #tpu.memory_space<vmem>>, %arg4: memref<16x128xf32, #tpu.memory_space<vmem>>) attributes {dimension_semantics = [#tpu.dimension_semantics<parallel>], iteration_bounds = array<i64: 1>, scalar_prefetch = 0 : i64, scratch_operands = 0 : i64, tpu.core_type = #tpu.core_type<tc>, window_params = [{transform_indices = @transform_0, window_bounds = array<i64: 16, 16>}, {pipeline_mode = #tpu.pipeline_mode<synchronous>, transform_indices = @transform_1, window_bounds = array<i64: 16, 128>}, {pipeline_mode = #tpu.pipeline_mode<synchronous>, transform_indices = @transform_2, window_bounds = array<i64: 1, 128>}, {transform_indices = @transform_3, window_bounds = array<i64: 16, 128>}]} {
    %c0 = arith.constant 0 : index
    %c0_0 = arith.constant 0 : index
    %0 = vector.load %arg1[%c0, %c0_0] : memref<16x16xf32, #tpu.memory_space<vmem>>, vector<16x16xf32>
    %c0_1 = arith.constant 0 : index
    %c0_2 = arith.constant 0 : index
    %1 = vector.load %arg2[%c0_1, %c0_2] : memref<16x128xf32, #tpu.memory_space<vmem>>, vector<16x128xf32>
    %cst = arith.constant dense<0.000000e+00> : vector<16x128xf32>
    %2 = tpu.matmul %0, %1, %cst {dimension_numbers = #tpu.dot_dimension_numbers<[1], [0], [0], [1], [0, 0, 1, 1], [], []>} : vector<16x16xf32>, vector<16x128xf32>, vector<16x128xf32> -> vector<16x128xf32>
    %c0_3 = arith.constant 0 : index
    %c0_4 = arith.constant 0 : index
    %3 = vector.load %arg3[%c0_3, %c0_4] : memref<1x128xf32, #tpu.memory_space<vmem>>, vector<1x128xf32>
    %4 = vector.broadcast %3 : vector<1x128xf32> to vector<16x128xf32>
    %5 = arith.addf %2, %4 : vector<16x128xf32>
    %6 = math.tanh %5 : vector<16x128xf32>
    %c0_5 = arith.constant 0 : index
    %c0_6 = arith.constant 0 : index
    %7 = vector.load %arg4[%c0_5, %c0_6] : memref<16x128xf32, #tpu.memory_space<vmem>>, vector<16x128xf32>
    tpu.vector_store %arg4[%c0_5, %c0_6], %6 {strides = array<i32>} : memref<16x128xf32, #tpu.memory_space<vmem>>, vector<16x128xf32>,
    return
  }
  func.func @transform_0(%arg0: i32) -> (i32, i32) {
    %c0_i32 = arith.constant 0 : i32
    %c0_i32_0 = arith.constant 0 : i32
    return %arg0, %c0_i32 : i32, i32
  }
  func.func @transform_1(%arg0: i32) -> (i32, i32) {
    %c0_i32 = arith.constant 0 : i32
    %c0_i32_0 = arith.constant 0 : i32
    %c0_i32_1 = arith.constant 0 : i32
    return %c0_i32, %c0_i32_0 : i32, i32
  }
  func.func @transform_2(%arg0: i32) -> (i32, i32) {
    %c0_i32 = arith.constant 0 : i32
    %c0_i32_0 = arith.constant 0 : i32
    %c0_i32_1 = arith.constant 0 : i32
    return %c0_i32, %c0_i32_0 : i32, i32
  }
  func.func @transform_3(%arg0: i32) -> (i32, i32) {
    %c0_i32 = arith.constant 0 : i32
    %c0_i32_0 = arith.constant 0 : i32
    return %arg0, %c0_i32 : i32, i32
  }
}

</mosaic_0001>

<llo_original>
// kernel: tpu_custom_call.1
$region0: #{tpu_custom_call.1}
  #allocation0 [shape = 'u32[]', space=smem, size = 0x4, offset = 0x4, fixed_abs, tag = 'smem constant byte address 0x4 - core index']
  #allocation1 [shape = 'u32[72,128]{1,0:T(1,128)}', space=vmem, size = 0x9000, scoped, tag = 'internal scratch']
  %s0 = inlined_call_operand.hbm [shape: f32[16,16], index: 0, kind: input, shape index: {}]
  %s1 = inlined_call_operand.hbm [shape: f32[16,128], index: 1, kind: input, shape index: {}]
  %s2 = inlined_call_operand.vmem [shape: f32[1,128], index: 2, kind: input, shape index: {}]
  %s3 = inlined_call_operand.hbm [shape: f32[16,128], index: 3, kind: output, shape index: {}]
  %s4 = sld [smem:[#allocation0]]
  $region30: #{tpu_custom_call.1} parent=0
    _
  %s6 = ssub.s32 1, %s4
  %s7 = scalar_select 0, %s6, %s4
  $region1: #{tpu_custom_call.1} parent=0
    #allocation2 [shape = 'u8[8192]{0}', space=vmem, size = 0x2000, scoped, tag = 'input window, operand 0, single buffered']
    #allocation3 [shape = 's32[1]{0}', space=sflag, size = 0x4, scoped, tag = 'scoped memory for tpu_custom_call.1']
    #allocation4 [shape = 's32[1]{0}', space=sflag, size = 0x4, scoped, tag = 'scoped memory for tpu_custom_call.1']
    #allocation5 [shape = 'u8[8192]{0}', space=vmem, size = 0x2000, scoped, tag = 'input window, operand 1, single buffered']
    #allocation6 [shape = 's32[1]{0}', space=sflag, size = 0x4, scoped, tag = 'scoped memory for tpu_custom_call.1']
    #allocation7 [shape = 'u8[8192]{0}', space=vmem, size = 0x2000, scoped, tag = 'output window, operand 0, single buffered']
    %8 = vsyncpa [#allocation3], 0
    %9 = vsyncpa [#allocation6], 0
    %10 = vsyncpa [#allocation4], 0
    // Predicated region
    $region2: #{tpu_custom_call.1} parent=1 // pred_check
      _
    $region3: #{tpu_custom_call.1} parent=1 // pred_check_branch
      %12 = sbr.rel (0) target = $region5
    $region4: #{tpu_custom_call.1} parent=1 // pred_region
      %14 = vsyncadd [#allocation3], 0
      %s15 = sshll.u32 %s0, 4
      %s16 = int_to_ptr.hbm [resolvable:$true] %s15
      %s17 = sshll.u32 [#allocation2], 4
      %s18 = int_to_ptr.vmem [resolvable:$true] %s17
      %23 = dma.hbm_to_vmem [thread:$0]  %s16, 256, %s18, [#allocation3], 128, 128, 8
    $region5: #{tpu_custom_call.1} parent=1 // pred_fallthru
      _
    // Predicated region
    $region6: #{tpu_custom_call.1} parent=1 // pred_check
      _
    $region7: #{tpu_custom_call.1} parent=1 // pred_check_branch
      %25 = sbr.rel (0) target = $region9
    $region8: #{tpu_custom_call.1} parent=1 // pred_region
      %27 = vsyncadd [#allocation6], 0
      %s28 = sshll.u32 %s1, 4
      %s29 = int_to_ptr.hbm [resolvable:$true] %s28
      %s30 = sshll.u32 [#allocation5], 4
      %s31 = int_to_ptr.vmem [resolvable:$true] %s30
      %36 = dma.hbm_to_vmem [thread:$0]  %s29, 256, %s31, [#allocation6], 128, 128, 8
    $region9: #{tpu_custom_call.1} parent=1 // pred_fallthru
      _
    // Predicated region
    $region10: #{tpu_custom_call.1} parent=1 // pred_check
      _
    $region11: #{tpu_custom_call.1} parent=1 // pred_check_branch
      %38 = sbr.rel (0) target = $region13
    $region12: #{tpu_custom_call.1} parent=1 // pred_region
      _
    $region13: #{tpu_custom_call.1} parent=1 // pred_fallthru
      _
    // Predicated region
    $region14: #{tpu_custom_call.1} parent=1 // pred_check
      _
    $region15: #{tpu_custom_call.1} parent=1 // pred_check_branch
      %40 = sbr.rel (0) target = $region17
    $region16: #{tpu_custom_call.1} parent=1 // pred_region
      %42 = dma.done [#allocation3], 256
    $region17: #{tpu_custom_call.1} parent=1 // pred_fallthru
      _
    // Predicated region
    $region18: #{tpu_custom_call.1} parent=1 // pred_check
      _
    $region19: #{tpu_custom_call.1} parent=1 // pred_check_branch
      %44 = sbr.rel (0) target = $region21
    $region20: #{tpu_custom_call.1} parent=1 // pred_region
      %46 = dma.done [#allocation6], 256
    $region21: #{tpu_custom_call.1} parent=1 // pred_fallthru
      _
    %v47 = vld [vmem:[#allocation2] sm:$0xff]
    %v48 = vld [vmem:[#allocation2 + $0x8] sm:$0xff]
    %v49 = vld [vmem:[#allocation5] sm:$0xff]
    %v50 = vld [vmem:[#allocation5 + $0x8] sm:$0xff]
    %v51 = vld [vmem:[%s2] sm:$0x1]
    %v53 = vperm.slane %v51, 0
    %vm55 = vcmask 130048
    %v57 = vsel %vm55, %v47, 0
    %v60 = vsel %vm55, %v48, 0
    %62 = vmatpush.msra.mxu0 0.0
    %63 = vmatpush.msra.mxu0 0.0
    %64 = vmatpush.msra.mxu0 0.0
    %65 = vmatpush.msra.mxu0 0.0
    %66 = vmatpush.msra.mxu0 0.0
    %67 = vmatpush.msra.mxu0 0.0
    %68 = vmatpush.msra.mxu0 0.0
    %69 = vmatpush.msra.mxu0 0.0
    %70 = vmatpush.msra.mxu0 0.0
    %71 = vmatpush.msra.mxu0 0.0
    %72 = vmatpush.msra.mxu0 0.0
    %73 = vmatpush.msra.mxu0 0.0
    %74 = vmatpush.msra.mxu0 0.0
    %75 = vmatpush.msra.mxu0 0.0
    %76 = vmatpush.msra.mxu0 %v50
    %77 = vmatpush.msra.mxu0 %v49
    %78 = vmatmul.f32.gmra.mxu0 %v57
    %v79 = vpop.f32.mrf.mxu0
    %v80 = vadd.f32 %v53, %v79
    %81 = vmatmul.f32.gmra.mxu0 %v60
    %v82 = vpop.f32.mrf.mxu0
    %v83 = vadd.f32 %v53, %v82
    %84 = vdwg.mxu0
    %v85 = vtanh.pop %v80
    %v86 = vtanh.pop %v83
    %87 = vst [vmem:[#allocation7] sm:$0xff] %v85
    %88 = vst [vmem:[#allocation7 + $0x8] sm:$0xff] %v86
    // Predicated region
    $region22: #{tpu_custom_call.1} parent=1 // pred_check
      _
    $region23: #{tpu_custom_call.1} parent=1 // pred_check_branch
      %90 = sbr.rel (0) target = $region25
    $region24: #{tpu_custom_call.1} parent=1 // pred_region
      %92 = vsyncadd [#allocation4], 0
      %s93 = sshll.u32 [#allocation7], 4
      %s94 = int_to_ptr.vmem [resolvable:$true] %s93
      %s95 = sshll.u32 %s3, 4
      %s96 = int_to_ptr.hbm [resolvable:$true] %s95
      %101 = dma.vmem_to_hbm [thread:$0]  %s94, 256, %s96, [#allocation4], 128, 128, 8
    $region25: #{tpu_custom_call.1} parent=1 // pred_fallthru
      _
    // Predicated region
    $region26: #{tpu_custom_call.1} parent=1 // pred_check
      _
    $region27: #{tpu_custom_call.1} parent=1 // pred_check_branch
      %103 = sbr.rel (0) target = $region29
    $region28: #{tpu_custom_call.1} parent=1 // pred_region
      %105 = dma.done [#allocation4], 256
    $region29: #{tpu_custom_call.1} parent=1 // pred_fallthru
      _
    %106 = vsyncpa [#allocation3], 1
    %107 = vsyncpa [#allocation6], 1
    %108 = vsyncpa [#allocation4], 1

</llo_original>
